<compile_context>
chip_gen: v7x
topology: tpu7x:2x2x1
jax: 0.10.0
libtpu: 0.0.40
codegen_flags: <defaults>
</compile_context>

<pallas_src>
import functools

import jax
import jax.numpy as jnp
from jax import lax
from jax.experimental import pallas as pl
from jax.experimental.pallas import tpu as pltpu

HIDDEN = 256


def _round_up(x, m):
    return (x + m - 1) // m * m


def _bf16_epilogue_supported():
    # bf16 VALU exists on v6e / v7x, not on v5e (or older): keep f32 epilogue there.
    try:
        kind = jax.devices()[0].device_kind.lower()
    except Exception:
        return False
    return any(tag in kind for tag in ("v6", "v7", "7x"))


def _pick_batch_tile(B, D):
    # VMEM bytes that scale with batch_tile (per batch row):
    #   x tile (f32, double-buffered)          : 2 * 4 * D
    #   h1/h2 intermediates (f32 + bf16 copies): ~10 * 256
    #   output tile (f32, double-buffered)     : 2 * 4
    bytes_per_row = 8 * D + 10 * HIDDEN + 8
    cap = (12 * 1024 * 1024) // bytes_per_row
    cap = max(128, min(2048, cap // 128 * 128))
    # Target >= 4 grid steps when B allows: shards across v7x's 2 TCs and gives the
    # x-stream pipeline some depth; bigger tiles amortize the ~0.35 us/step overhead.
    tile = _round_up(pl.cdiv(B, 4), 128)
    return int(min(max(tile, 128), cap))


def _vmem_limit_bytes(batch_tile, D, act_dtype):
    ab = jnp.dtype(act_dtype).itemsize
    est = 0
    est += 2 * batch_tile * D * 4                    # x blocks (f32, double-buffered)
    est += 2 * 8 * batch_tile * 4                    # (1, bt) output tile, sublane-padded
    est += 2 * (HIDDEN * D + HIDDEN * HIDDEN) * 2    # w1/w2 bf16, double-buffered
    est += 2 * 3 * HIDDEN * 128 * ab                 # b1/b2/w3 (256,1) blocks, lane-padded
    est += batch_tile * HIDDEN * (4 + 4 + 2 * ab)    # live h1/h2 intermediates
    return int(min(64 * 1024 * 1024, max(32 * 1024 * 1024, 2 * est)))


def _critic_kernel(x_ref, w1_ref, b1_ref, w2_ref, b2_ref, w3_ref, b3_ref, o_ref,
                   *, act_dtype):
    # x arrives as a (bt, D) f32 tile straight from HBM; cast to bf16 here (hides
    # under MXU slack) and contract over D with NT dimension numbers so activations
    # live in the transposed (feature, batch-on-lanes) orientation.
    x = x_ref[...].astype(jnp.bfloat16)                                   # (bt, D)
    h1 = lax.dot_general(w1_ref[...], x, (((1,), (1,)), ((), ())),
                         preferred_element_type=jnp.float32)              # (256, bt)
    h1 = jnp.maximum(h1.astype(act_dtype) + b1_ref[...], 0)               # bias+ReLU
    h2 = jnp.dot(w2_ref[...], h1.astype(jnp.bfloat16),
                 preferred_element_type=jnp.float32)                      # (256, bt)
    h2 = jnp.maximum(h2.astype(act_dtype) + b2_ref[...], 0)               # bias+ReLU
    # Final 256 -> 1 layer: VPU multiply + XLU sublane reduce, f32 accumulation.
    y = jnp.sum((h2 * w3_ref[...]).astype(jnp.float32), axis=0, keepdims=True)
    o_ref[...] = (y + b3_ref[0, 0]).astype(o_ref.dtype)                   # lane-dense (1, bt)


def critic_forward(state, params, *, batch_tile=None):
    """Critic MLP forward pass as a single fused Pallas TPU kernel.

    state:  (B, input_dim) float32
    params: dict with
        w1 (256, D)   b1 (256, 1)
        w2 (256, 256) b2 (256, 1)
        w3 (256, 1)   b3 (1, 1)
    Returns (B, 1) float32.
    """
    B, D = state.shape
    use_bf16_ep = _bf16_epilogue_supported()
    act_dtype = jnp.bfloat16 if use_bf16_ep else jnp.float32

    if batch_tile is None:
        batch_tile = _pick_batch_tile(B, D)
    else:
        batch_tile = _round_up(batch_tile, 128)
    grid = (pl.cdiv(B, batch_tile),)

    w1 = params["w1"].astype(jnp.bfloat16)           # (256, D)
    w2 = params["w2"].astype(jnp.bfloat16)           # (256, 256)
    b1 = params["b1"].astype(act_dtype)              # (256, 1)
    b2 = params["b2"].astype(act_dtype)              # (256, 1)
    w3 = params["w3"].astype(act_dtype)              # (256, 1)
    b3 = params["b3"].astype(jnp.float32)            # (1, 1) -> SMEM scalar

    kernel = functools.partial(_critic_kernel, act_dtype=act_dtype)

    # NOTE: for very large D (>~4k) the constant-index weight blocks could be
    # single-buffered (pipeline_mode=pl.Buffered(1)) or staged once into a VMEM
    # scratch; unnecessary at these sizes (vmem_limit is derived from tile math).
    out = pl.pallas_call(
        kernel,
        out_shape=jax.ShapeDtypeStruct((1, B), jnp.float32),
        grid_spec=pltpu.PrefetchScalarGridSpec(
            num_scalar_prefetch=0,
            grid=grid,
            in_specs=[
                pl.BlockSpec((batch_tile, D), lambda i: (i, 0)),        # x tile (f32)
                pl.BlockSpec((HIDDEN, D), lambda i: (0, 0)),            # w1
                pl.BlockSpec((HIDDEN, 1), lambda i: (0, 0)),            # b1
                pl.BlockSpec((HIDDEN, HIDDEN), lambda i: (0, 0)),       # w2
                pl.BlockSpec((HIDDEN, 1), lambda i: (0, 0)),            # b2
                pl.BlockSpec((HIDDEN, 1), lambda i: (0, 0)),            # w3 column
                pl.BlockSpec(memory_space=pltpu.MemorySpace.SMEM),      # b3 scalar
            ],
            out_specs=pl.BlockSpec((1, batch_tile), lambda i: (0, i)),  # lane-dense
        ),
        compiler_params=pltpu.CompilerParams(
            dimension_semantics=("parallel",),        # megacore-shardable batch axis
            vmem_limit_bytes=_vmem_limit_bytes(batch_tile, D, act_dtype),
        ),
    )(state, w1, b1, w2, b2, w3, b3)

    return out.reshape(B, 1)


def init_critic_params(key, input_dim):
    """PyTorch nn.Linear default init: U(-1/sqrt(fan_in), +1/sqrt(fan_in))."""
    def linear(key, fan_in, fan_out):
        kw, kb = jax.random.split(key)
        bound = 1.0 / jnp.sqrt(jnp.float32(fan_in))
        w = jax.random.uniform(kw, (fan_out, fan_in), jnp.float32, -bound, bound)
        b = jax.random.uniform(kb, (fan_out, 1), jnp.float32, -bound, bound)
        return w, b

    k1, k2, k3 = jax.random.split(key, 3)
    w1, b1 = linear(k1, input_dim, HIDDEN)            # (256, D), (256, 1)
    w2, b2 = linear(k2, HIDDEN, HIDDEN)               # (256, 256), (256, 1)
    w3_row, b3 = linear(k3, HIDDEN, 1)                # (1, 256), (1, 1)
    return {"w1": w1, "b1": b1, "w2": w2, "b2": b2,
            "w3": w3_row.T, "b3": b3}                  # w3 stored as (256, 1) column


def critic_reference(state, params):
    h1 = jnp.maximum(state @ params["w1"].T + params["b1"].T, 0.0)
    h2 = jnp.maximum(h1 @ params["w2"].T + params["b2"].T, 0.0)
    return h2 @ params["w3"] + params["b3"]


if __name__ == "__main__":
    key = jax.random.PRNGKey(0)
    k_params, k_state1, k_state2 = jax.random.split(key, 3)

    input_dim = 32
    params = init_critic_params(k_params, input_dim)

    # Small shape (matches the module's typical usage); single grid step.
    batch = 8
    state = jax.random.normal(k_state1, (batch, input_dim), dtype=jnp.float32)
    out = jax.block_until_ready(critic_forward(state, params))
    ref = critic_reference(state, params)
    assert out.shape == (batch, 1), out.shape
    # bf16 matmul inputs (f32 accumulation) + (chip-dependent) bf16 epilogue
    # -> loosened tolerance vs the f32 reference.
    assert jnp.allclose(out, ref, atol=5e-2, rtol=5e-2), "Pallas output mismatch (small batch)"

    # Gridded path: default tile selection -> tile 128, grid (2,), ragged last block
    # (no explicit padding; padded output columns are discarded in the wrapper).
    batch2 = 200
    state2 = jax.random.normal(k_state2, (batch2, input_dim), dtype=jnp.float32)
    out2 = jax.block_until_ready(critic_forward(state2, params))
    ref2 = critic_reference(state2, params)
    assert out2.shape == (batch2, 1), out2.shape
    assert jnp.allclose(out2, ref2, atol=5e-2, rtol=5e-2), "Pallas output mismatch (tiled batch)"

    print("KERNEL_OK")
</pallas_src>

<mosaic_0001>
module attributes {stable_mosaic.version = 11 : i64} {
  func.func @_critic_kernel(%arg0: i32, %arg1: memref<128x32xf32, #tpu.memory_space<vmem>>, %arg2: memref<256x32xbf16, #tpu.memory_space<vmem>>, %arg3: memref<256x1xf32, #tpu.memory_space<vmem>>, %arg4: memref<256x256xbf16, #tpu.memory_space<vmem>>, %arg5: memref<256x1xf32, #tpu.memory_space<vmem>>, %arg6: memref<256x1xf32, #tpu.memory_space<vmem>>, %arg7: memref<1x1xf32, #tpu.memory_space<smem>>, %arg8: memref<1x128xf32, #tpu.memory_space<vmem>>) attributes {dimension_semantics = [#tpu.dimension_semantics<parallel>], iteration_bounds = array<i64: 1>, scalar_prefetch = 0 : i64, scratch_operands = 0 : i64, tpu.core_type = #tpu.core_type<tc>, window_params = [{transform_indices = @transform_0, window_bounds = array<i64: 128, 32>}, {pipeline_mode = #tpu.pipeline_mode<synchronous>, transform_indices = @transform_1, window_bounds = array<i64: 256, 32>}, {pipeline_mode = #tpu.pipeline_mode<synchronous>, transform_indices = @transform_2, window_bounds = array<i64: 256, 1>}, {pipeline_mode = #tpu.pipeline_mode<synchronous>, transform_indices = @transform_3, window_bounds = array<i64: 256, 256>}, {pipeline_mode = #tpu.pipeline_mode<synchronous>, transform_indices = @transform_4, window_bounds = array<i64: 256, 1>}, {pipeline_mode = #tpu.pipeline_mode<synchronous>, transform_indices = @transform_5, window_bounds = array<i64: 256, 1>}, {transform_indices = @transform_6, window_bounds = array<i64: 1, 1>}, {transform_indices = @transform_7, window_bounds = array<i64: 1, 128>}]} {
    %c0 = arith.constant 0 : index
    %c0_0 = arith.constant 0 : index
    %0 = vector.load %arg1[%c0, %c0_0] : memref<128x32xf32, #tpu.memory_space<vmem>>, vector<128x32xf32>
    %1 = arith.truncf %0 : vector<128x32xf32> to vector<128x32xbf16>
    %c0_1 = arith.constant 0 : index
    %c0_2 = arith.constant 0 : index
    %2 = vector.load %arg2[%c0_1, %c0_2] : memref<256x32xbf16, #tpu.memory_space<vmem>>, vector<256x32xbf16>
    %cst = arith.constant dense<0.000000e+00> : vector<256x128xf32>
    %3 = tpu.matmul %2, %1, %cst {dimension_numbers = #tpu.dot_dimension_numbers<[1], [1], [0], [0], [0, 0, 1, 0], [], []>} : vector<256x32xbf16>, vector<128x32xbf16>, vector<256x128xf32> -> vector<256x128xf32>
    %c0_3 = arith.constant 0 : index
    %c0_4 = arith.constant 0 : index
    %4 = vector.load %arg3[%c0_3, %c0_4] : memref<256x1xf32, #tpu.memory_space<vmem>>, vector<256x1xf32>
    %5 = vector.broadcast %4 : vector<256x1xf32> to vector<256x128xf32>
    %6 = arith.addf %3, %5 : vector<256x128xf32>
    %cst_5 = arith.constant 0.000000e+00 : f32
    %7 = vector.broadcast %cst_5 : f32 to vector<256x128xf32>
    %8 = arith.maximumf %6, %7 : vector<256x128xf32>
    %c0_6 = arith.constant 0 : index
    %c0_7 = arith.constant 0 : index
    %9 = vector.load %arg4[%c0_6, %c0_7] : memref<256x256xbf16, #tpu.memory_space<vmem>>, vector<256x256xbf16>
    %10 = arith.truncf %8 : vector<256x128xf32> to vector<256x128xbf16>
    %cst_8 = arith.constant dense<0.000000e+00> : vector<256x128xf32>
    %11 = tpu.matmul %9, %10, %cst_8 {dimension_numbers = #tpu.dot_dimension_numbers<[1], [0], [0], [1], [0, 0, 1, 1], [], []>} : vector<256x256xbf16>, vector<256x128xbf16>, vector<256x128xf32> -> vector<256x128xf32>
    %c0_9 = arith.constant 0 : index
    %c0_10 = arith.constant 0 : index
    %12 = vector.load %arg5[%c0_9, %c0_10] : memref<256x1xf32, #tpu.memory_space<vmem>>, vector<256x1xf32>
    %13 = vector.broadcast %12 : vector<256x1xf32> to vector<256x128xf32>
    %14 = arith.addf %11, %13 : vector<256x128xf32>
    %cst_11 = arith.constant 0.000000e+00 : f32
    %15 = vector.broadcast %cst_11 : f32 to vector<256x128xf32>
    %16 = arith.maximumf %14, %15 : vector<256x128xf32>
    %c0_12 = arith.constant 0 : index
    %c0_13 = arith.constant 0 : index
    %17 = vector.load %arg6[%c0_12, %c0_13] : memref<256x1xf32, #tpu.memory_space<vmem>>, vector<256x1xf32>
    %18 = vector.broadcast %17 : vector<256x1xf32> to vector<256x128xf32>
    %19 = arith.mulf %16, %18 : vector<256x128xf32>
    %cst_14 = arith.constant dense<0.000000e+00> : vector<128xf32>
    %20 = vector.multi_reduction <add>, %19, %cst_14 [0] : vector<256x128xf32> to vector<128xf32>
    %21 = vector.shape_cast %20 : vector<128xf32> to vector<1x128xf32>
    %c0_15 = arith.constant 0 : index
    %c0_16 = arith.constant 0 : index
    %22 = memref.load %arg7[%c0_15, %c0_16] : memref<1x1xf32, #tpu.memory_space<smem>>
    %23 = vector.broadcast %22 : f32 to vector<1x128xf32>
    %24 = arith.addf %21, %23 : vector<1x128xf32>
    %c0_17 = arith.constant 0 : index
    %c0_18 = arith.constant 0 : index
    %25 = vector.load %arg8[%c0_17, %c0_18] : memref<1x128xf32, #tpu.memory_space<vmem>>, vector<1x128xf32>
    tpu.vector_store %arg8[%c0_17, %c0_18], %24 {strides = array<i32>} : memref<1x128xf32, #tpu.memory_space<vmem>>, vector<1x128xf32>,
    return
  }
  func.func @transform_0(%arg0: i32) -> (i32, i32) {
    %c0_i32 = arith.constant 0 : i32
    %c0_i32_0 = arith.constant 0 : i32
    return %arg0, %c0_i32 : i32, i32
  }
  func.func @transform_1(%arg0: i32) -> (i32, i32) {
    %c0_i32 = arith.constant 0 : i32
    %c0_i32_0 = arith.constant 0 : i32
    %c0_i32_1 = arith.constant 0 : i32
    return %c0_i32, %c0_i32_0 : i32, i32
  }
  func.func @transform_2(%arg0: i32) -> (i32, i32) {
    %c0_i32 = arith.constant 0 : i32
    %c0_i32_0 = arith.constant 0 : i32
    %c0_i32_1 = arith.constant 0 : i32
    return %c0_i32, %c0_i32_0 : i32, i32
  }
  func.func @transform_3(%arg0: i32) -> (i32, i32) {
    %c0_i32 = arith.constant 0 : i32
    %c0_i32_0 = arith.constant 0 : i32
    %c0_i32_1 = arith.constant 0 : i32
    return %c0_i32, %c0_i32_0 : i32, i32
  }
  func.func @transform_4(%arg0: i32) -> (i32, i32) {
    %c0_i32 = arith.constant 0 : i32
    %c0_i32_0 = arith.constant 0 : i32
    %c0_i32_1 = arith.constant 0 : i32
    return %c0_i32, %c0_i32_0 : i32, i32
  }
  func.func @transform_5(%arg0: i32) -> (i32, i32) {
    %c0_i32 = arith.constant 0 : i32
    %c0_i32_0 = arith.constant 0 : i32
    %c0_i32_1 = arith.constant 0 : i32
    return %c0_i32, %c0_i32_0 : i32, i32
  }
  func.func @transform_6(%arg0: i32) -> (i32, i32) {
    %c0_i32 = arith.constant 0 : i32
    %c0_i32_0 = arith.constant 0 : i32
    %c0_i32_1 = arith.constant 0 : i32
    return %c0_i32, %c0_i32_0 : i32, i32
  }
  func.func @transform_7(%arg0: i32) -> (i32, i32) {
    %c0_i32 = arith.constant 0 : i32
    %c0_i32_0 = arith.constant 0 : i32
    return %c0_i32, %arg0 : i32, i32
  }
}

</mosaic_0001>

<llo_original>
// kernel: tpu_custom_call.1
$region0: #{tpu_custom_call.1}
  #allocation0 [shape = 'u32[]', space=smem, size = 0x4, offset = 0x4, fixed_abs, tag = 'smem constant byte address 0x4 - core index']
  #allocation1 [shape = 'u32[144,128]{1,0:T(1,128)}', space=vmem, size = 0x12000, scoped, tag = 'internal scratch']
  #allocation2 [shape = 'f32[1,1]{1,0:T(1,128)S(6)}', space=smem, size = 0x200, scoped, tag = 'scoped memory for tpu_custom_call.1']
  %s0 = inlined_call_operand.vmem [shape: f32[8,32], index: 0, kind: input, shape index: {}]
  %s1 = inlined_call_operand.vmem [shape: bf16[256,32], index: 1, kind: input, shape index: {}]
  %s2 = inlined_call_operand.vmem [shape: f32[256,1], index: 2, kind: input, shape index: {}]
  %s3 = inlined_call_operand.vmem [shape: bf16[256,256], index: 3, kind: input, shape index: {}]
  %s4 = inlined_call_operand.vmem [shape: f32[256,1], index: 4, kind: input, shape index: {}]
  %s5 = inlined_call_operand.vmem [shape: f32[256,1], index: 5, kind: input, shape index: {}]
  %s6 = inlined_call_operand.<no memory space> [shape: f32[1,1], index: 6, kind: input, shape index: {}]
  %s7 = inlined_call_operand.hbm [shape: f32[1,8], index: 7, kind: output, shape index: {}]
  %s8 = sld [smem:[#allocation0]]
  $region38: #{tpu_custom_call.1} parent=0
    _
  %s10 = ssub.s32 1, %s8
  %s11 = scalar_select 0, %s10, %s8
  %12 = sst [smem:[#allocation2]] %s6
  $region1: #{tpu_custom_call.1} parent=0
    #allocation3 [shape = 'u8[512]{0}', space=vmem, size = 0x400, scoped, tag = 'output window, operand 0, single buffered']
    #allocation4 [shape = 's32[1]{0}', space=sflag, size = 0x4, scoped, tag = 'scoped memory for tpu_custom_call.1']
    %13 = vsyncpa [#allocation4], 0
    // Predicated region
    $region2: #{tpu_custom_call.1} parent=1 // pred_check
      _
    $region3: #{tpu_custom_call.1} parent=1 // pred_check_branch
      %15 = sbr.rel (0) target = $region5
    $region4: #{tpu_custom_call.1} parent=1 // pred_region
      _
    $region5: #{tpu_custom_call.1} parent=1 // pred_fallthru
      _
    // Predicated region
    $region6: #{tpu_custom_call.1} parent=1 // pred_check
      _
    $region7: #{tpu_custom_call.1} parent=1 // pred_check_branch
      %17 = sbr.rel (0) target = $region9
    $region8: #{tpu_custom_call.1} parent=1 // pred_region
      _
    $region9: #{tpu_custom_call.1} parent=1 // pred_fallthru
      _
    // Predicated region
    $region10: #{tpu_custom_call.1} parent=1 // pred_check
      _
    $region11: #{tpu_custom_call.1} parent=1 // pred_check_branch
      %19 = sbr.rel (0) target = $region13
    $region12: #{tpu_custom_call.1} parent=1 // pred_region
      _
    $region13: #{tpu_custom_call.1} parent=1 // pred_fallthru
      _
    // Predicated region
    $region14: #{tpu_custom_call.1} parent=1 // pred_check
      _
    $region15: #{tpu_custom_call.1} parent=1 // pred_check_branch
      %21 = sbr.rel (0) target = $region17
    $region16: #{tpu_custom_call.1} parent=1 // pred_region
      _
    $region17: #{tpu_custom_call.1} parent=1 // pred_fallthru
      _
    // Predicated region
    $region18: #{tpu_custom_call.1} parent=1 // pred_check
      _
    $region19: #{tpu_custom_call.1} parent=1 // pred_check_branch
      %23 = sbr.rel (0) target = $region21
    $region20: #{tpu_custom_call.1} parent=1 // pred_region
      _
    $region21: #{tpu_custom_call.1} parent=1 // pred_fallthru
      _
    // Predicated region
    $region22: #{tpu_custom_call.1} parent=1 // pred_check
      _
    $region23: #{tpu_custom_call.1} parent=1 // pred_check_branch
      %25 = sbr.rel (0) target = $region25
    $region24: #{tpu_custom_call.1} parent=1 // pred_region
      _
    $region25: #{tpu_custom_call.1} parent=1 // pred_fallthru
      _
    // Predicated region
    $region26: #{tpu_custom_call.1} parent=1 // pred_check
      _
    $region27: #{tpu_custom_call.1} parent=1 // pred_check_branch
      %27 = sbr.rel (0) target = $region29
    $region28: #{tpu_custom_call.1} parent=1 // pred_region
      _
    $region29: #{tpu_custom_call.1} parent=1 // pred_fallthru
      _
    %v29 = vld [vmem:[%s0] sm:$0xff]
    %v30 = vld [vmem:[%s0 + $0x8] sm:$0xff]
    %v31 = vld [vmem:[%s0 + $0x10] sm:$0xff]
    %v32 = vld [vmem:[%s0 + $0x18] sm:$0xff]
    %v33 = vld [vmem:[%s0 + $0x20] sm:$0xff]
    %v34 = vld [vmem:[%s0 + $0x28] sm:$0xff]
    %v35 = vld [vmem:[%s0 + $0x30] sm:$0xff]
    %v36 = vld [vmem:[%s0 + $0x38] sm:$0xff]
    %v37 = vld [vmem:[%s0 + $0x40] sm:$0xff]
    %v38 = vld [vmem:[%s0 + $0x48] sm:$0xff]
    %v39 = vld [vmem:[%s0 + $0x50] sm:$0xff]
    %v40 = vld [vmem:[%s0 + $0x58] sm:$0xff]
    %v41 = vld [vmem:[%s0 + $0x60] sm:$0xff]
    %v42 = vld [vmem:[%s0 + $0x68] sm:$0xff]
    %v43 = vld [vmem:[%s0 + $0x70] sm:$0xff]
    %v44 = vld [vmem:[%s0 + $0x78] sm:$0xff]
    %v45 = vpack.c.bf16 %v30, %v29
    %v46 = vpack.c.bf16 %v32, %v31
    %v47 = vpack.c.bf16 %v34, %v33
    %v48 = vpack.c.bf16 %v36, %v35
    %v49 = vpack.c.bf16 %v38, %v37
    %v50 = vpack.c.bf16 %v40, %v39
    %v51 = vpack.c.bf16 %v42, %v41
    %v52 = vpack.c.bf16 %v44, %v43
    %v53 = vld [vmem:[%s1] sm:$0xf]
    %v54 = vld [vmem:[%s1 + $0x4] sm:$0xf]
    %v55 = vld [vmem:[%s1 + $0x8] sm:$0xf]
    %v56 = vld [vmem:[%s1 + $0xc] sm:$0xf]
    %v57 = vld [vmem:[%s1 + $0x10] sm:$0xf]
    %v58 = vld [vmem:[%s1 + $0x14] sm:$0xf]
    %v59 = vld [vmem:[%s1 + $0x18] sm:$0xf]
    %v60 = vld [vmem:[%s1 + $0x1c] sm:$0xf]
    %v61 = vld [vmem:[%s1 + $0x20] sm:$0xf]
    %v62 = vld [vmem:[%s1 + $0x24] sm:$0xf]
    %v63 = vld [vmem:[%s1 + $0x28] sm:$0xf]
    %v64 = vld [vmem:[%s1 + $0x2c] sm:$0xf]
    %v65 = vld [vmem:[%s1 + $0x30] sm:$0xf]
    %v66 = vld [vmem:[%s1 + $0x34] sm:$0xf]
    %v67 = vld [vmem:[%s1 + $0x38] sm:$0xf]
    %v68 = vld [vmem:[%s1 + $0x3c] sm:$0xf]
    %v69 = vld [vmem:[%s1 + $0x40] sm:$0xf]
    %v70 = vld [vmem:[%s1 + $0x44] sm:$0xf]
    %v71 = vld [vmem:[%s1 + $0x48] sm:$0xf]
    %v72 = vld [vmem:[%s1 + $0x4c] sm:$0xf]
    %v73 = vld [vmem:[%s1 + $0x50] sm:$0xf]
    %v74 = vld [vmem:[%s1 + $0x54] sm:$0xf]
    %v75 = vld [vmem:[%s1 + $0x58] sm:$0xf]
    %v76 = vld [vmem:[%s1 + $0x5c] sm:$0xf]
    %v77 = vld [vmem:[%s1 + $0x60] sm:$0xf]
    %v78 = vld [vmem:[%s1 + $0x64] sm:$0xf]
    %v79 = vld [vmem:[%s1 + $0x68] sm:$0xf]
    %v80 = vld [vmem:[%s1 + $0x6c] sm:$0xf]
    %v81 = vld [vmem:[%s1 + $0x70] sm:$0xf]
    %v82 = vld [vmem:[%s1 + $0x74] sm:$0xf]
    %v83 = vld [vmem:[%s1 + $0x78] sm:$0xf]
    %v84 = vld [vmem:[%s1 + $0x7c] sm:$0xf]
    %v85 = vld [vmem:[%s2] sm:$0xff]
    %v86 = vld [vmem:[%s2 + $0x8] sm:$0xff]
    %v87 = vld [vmem:[%s2 + $0x10] sm:$0xff]
    %v88 = vld [vmem:[%s2 + $0x18] sm:$0xff]
    %v89 = vld [vmem:[%s2 + $0x20] sm:$0xff]
    %v90 = vld [vmem:[%s2 + $0x28] sm:$0xff]
    %v91 = vld [vmem:[%s2 + $0x30] sm:$0xff]
    %v92 = vld [vmem:[%s2 + $0x38] sm:$0xff]
    %v93 = vld [vmem:[%s2 + $0x40] sm:$0xff]
    %v94 = vld [vmem:[%s2 + $0x48] sm:$0xff]
    %v95 = vld [vmem:[%s2 + $0x50] sm:$0xff]
    %v96 = vld [vmem:[%s2 + $0x58] sm:$0xff]
    %v97 = vld [vmem:[%s2 + $0x60] sm:$0xff]
    %v98 = vld [vmem:[%s2 + $0x68] sm:$0xff]
    %v99 = vld [vmem:[%s2 + $0x70] sm:$0xff]
    %v100 = vld [vmem:[%s2 + $0x78] sm:$0xff]
    %v101 = vld [vmem:[%s2 + $0x80] sm:$0xff]
    %v102 = vld [vmem:[%s2 + $0x88] sm:$0xff]
    %v103 = vld [vmem:[%s2 + $0x90] sm:$0xff]
    %v104 = vld [vmem:[%s2 + $0x98] sm:$0xff]
    %v105 = vld [vmem:[%s2 + $0xa0] sm:$0xff]
    %v106 = vld [vmem:[%s2 + $0xa8] sm:$0xff]
    %v107 = vld [vmem:[%s2 + $0xb0] sm:$0xff]
    %v108 = vld [vmem:[%s2 + $0xb8] sm:$0xff]
    %v109 = vld [vmem:[%s2 + $0xc0] sm:$0xff]
    %v110 = vld [vmem:[%s2 + $0xc8] sm:$0xff]
    %v111 = vld [vmem:[%s2 + $0xd0] sm:$0xff]
    %v112 = vld [vmem:[%s2 + $0xd8] sm:$0xff]
    %v113 = vld [vmem:[%s2 + $0xe0] sm:$0xff]
    %v114 = vld [vmem:[%s2 + $0xe8] sm:$0xff]
    %v115 = vld [vmem:[%s2 + $0xf0] sm:$0xff]
    %v116 = vld [vmem:[%s2 + $0xf8] sm:$0xff]
    %118 = vset.pattern.permute.xlu0 0
    %119 = vperm.xlu0 %118, %v85
    %v120 = vpop.permute.xlu0 %119
    %123 = vset.pattern.permute.xlu0 0
    %124 = vperm.xlu0 %123, %v86
    %v125 = vpop.permute.xlu0 %124
    %128 = vset.pattern.permute.xlu0 0
    %129 = vperm.xlu0 %128, %v87
    %v130 = vpop.permute.xlu0 %129
    %133 = vset.pattern.permute.xlu0 0
    %134 = vperm.xlu0 %133, %v88
    %v135 = vpop.permute.xlu0 %134
    %138 = vset.pattern.permute.xlu0 0
    %139 = vperm.xlu0 %138, %v89
    %v140 = vpop.permute.xlu0 %139
    %143 = vset.pattern.permute.xlu0 0
    %144 = vperm.xlu0 %143, %v90
    %v145 = vpop.permute.xlu0 %144
    %148 = vset.pattern.permute.xlu0 0
    %149 = vperm.xlu0 %148, %v91
    %v150 = vpop.permute.xlu0 %149
    %153 = vset.pattern.permute.xlu0 0
    %154 = vperm.xlu0 %153, %v92
    %v155 = vpop.permute.xlu0 %154
    %158 = vset.pattern.permute.xlu0 0
    %159 = vperm.xlu0 %158, %v93
    %v160 = vpop.permute.xlu0 %159
    %163 = vset.pattern.permute.xlu0 0
    %164 = vperm.xlu0 %163, %v94
    %v165 = vpop.permute.xlu0 %164
    %168 = vset.pattern.permute.xlu0 0
    %169 = vperm.xlu0 %168, %v95
    %v170 = vpop.permute.xlu0 %169
    %173 = vset.pattern.permute.xlu0 0
    %174 = vperm.xlu0 %173, %v96
    %v175 = vpop.permute.xlu0 %174
    %178 = vset.pattern.permute.xlu0 0
    %179 = vperm.xlu0 %178, %v97
    %v180 = vpop.permute.xlu0 %179
    %183 = vset.pattern.permute.xlu0 0
    %184 = vperm.xlu0 %183, %v98
    %v185 = vpop.permute.xlu0 %184
    %188 = vset.pattern.permute.xlu0 0
    %189 = vperm.xlu0 %188, %v99
    %v190 = vpop.permute.xlu0 %189
    %193 = vset.pattern.permute.xlu0 0
    %194 = vperm.xlu0 %193, %v100
    %v195 = vpop.permute.xlu0 %194
    %198 = vset.pattern.permute.xlu0 0
    %199 = vperm.xlu0 %198, %v101
    %v200 = vpop.permute.xlu0 %199
    %203 = vset.pattern.permute.xlu0 0
    %204 = vperm.xlu0 %203, %v102
    %v205 = vpop.permute.xlu0 %204
    %208 = vset.pattern.permute.xlu0 0
    %209 = vperm.xlu0 %208, %v103
    %v210 = vpop.permute.xlu0 %209
    %213 = vset.pattern.permute.xlu0 0
    %214 = vperm.xlu0 %213, %v104
    %v215 = vpop.permute.xlu0 %214
    %218 = vset.pattern.permute.xlu0 0
    %219 = vperm.xlu0 %218, %v105
    %v220 = vpop.permute.xlu0 %219
    %223 = vset.pattern.permute.xlu0 0
    %224 = vperm.xlu0 %223, %v106
    %v225 = vpop.permute.xlu0 %224
    %228 = vset.pattern.permute.xlu0 0
    %229 = vperm.xlu0 %228, %v107
    %v230 = vpop.permute.xlu0 %229
    %233 = vset.pattern.permute.xlu0 0
    %234 = vperm.xlu0 %233, %v108
    %v235 = vpop.permute.xlu0 %234
    %238 = vset.pattern.permute.xlu0 0
    %239 = vperm.xlu0 %238, %v109
    %v240 = vpop.permute.xlu0 %239
    %243 = vset.pattern.permute.xlu0 0
    %244 = vperm.xlu0 %243, %v110
    %v245 = vpop.permute.xlu0 %244
    %248 = vset.pattern.permute.xlu0 0
    %249 = vperm.xlu0 %248, %v111
    %v250 = vpop.permute.xlu0 %249
    %253 = vset.pattern.permute.xlu0 0
    %254 = vperm.xlu0 %253, %v112
    %v255 = vpop.permute.xlu0 %254
    %258 = vset.pattern.permute.xlu0 0
    %259 = vperm.xlu0 %258, %v113
    %v260 = vpop.permute.xlu0 %259
    %263 = vset.pattern.permute.xlu0 0
    %264 = vperm.xlu0 %263, %v114
    %v265 = vpop.permute.xlu0 %264
    %268 = vset.pattern.permute.xlu0 0
    %269 = vperm.xlu0 %268, %v115
    %v270 = vpop.permute.xlu0 %269
    %273 = vset.pattern.permute.xlu0 0
    %274 = vperm.xlu0 %273, %v116
    %v275 = vpop.permute.xlu0 %274
    %v309 = vunpack.c.l.b16 %v53
    %v310 = vunpack.c.l.b16 %v54
    %v311 = vunpack.c.l.b16 %v55
    %v312 = vunpack.c.l.b16 %v56
    %v313 = vunpack.c.l.b16 %v57
    %v314 = vunpack.c.l.b16 %v58
    %v315 = vunpack.c.l.b16 %v59
    %v316 = vunpack.c.l.b16 %v60
    %v317 = vunpack.c.l.b16 %v61
    %v318 = vunpack.c.l.b16 %v62
    %v319 = vunpack.c.l.b16 %v63
    %v320 = vunpack.c.l.b16 %v64
    %v321 = vunpack.c.l.b16 %v65
    %v322 = vunpack.c.l.b16 %v66
    %v323 = vunpack.c.l.b16 %v67
    %v324 = vunpack.c.l.b16 %v68
    %v325 = vunpack.c.l.b16 %v69
    %v326 = vunpack.c.l.b16 %v70
    %v327 = vunpack.c.l.b16 %v71
    %v328 = vunpack.c.l.b16 %v72
    %v329 = vunpack.c.l.b16 %v73
    %v330 = vunpack.c.l.b16 %v74
    %v331 = vunpack.c.l.b16 %v75
    %v332 = vunpack.c.l.b16 %v76
    %v333 = vunpack.c.l.b16 %v77
    %v334 = vunpack.c.l.b16 %v78
    %v335 = vunpack.c.l.b16 %v79
    %v336 = vunpack.c.l.b16 %v80
    %v337 = vunpack.c.l.b16 %v81
    %v338 = vunpack.c.l.b16 %v82
    %v339 = vunpack.c.l.b16 %v83
    %v340 = vunpack.c.l.b16 %v84
    %v341 = vpack.c.b16 %v310, %v309
    %v342 = vpack.c.b16 %v312, %v311
    %v343 = vpack.c.b16 %v314, %v313
    %v344 = vpack.c.b16 %v316, %v315
    %v345 = vpack.c.b16 %v318, %v317
    %v346 = vpack.c.b16 %v320, %v319
    %v347 = vpack.c.b16 %v322, %v321
    %v348 = vpack.c.b16 %v324, %v323
    %v349 = vpack.c.b16 %v326, %v325
    %v350 = vpack.c.b16 %v328, %v327
    %v351 = vpack.c.b16 %v330, %v329
    %v352 = vpack.c.b16 %v332, %v331
    %v353 = vpack.c.b16 %v334, %v333
    %v354 = vpack.c.b16 %v336, %v335
    %v355 = vpack.c.b16 %v338, %v337
    %v356 = vpack.c.b16 %v340, %v339
    %vm357 = vcmask 261120
    %v359 = vsel %vm357, %v341, 0
    %v362 = vsel %vm357, %v342, 0
    %v365 = vsel %vm357, %v343, 0
    %v368 = vsel %vm357, %v344, 0
    %v371 = vsel %vm357, %v345, 0
    %v374 = vsel %vm357, %v346, 0
    %v377 = vsel %vm357, %v347, 0
    %v380 = vsel %vm357, %v348, 0
    %v383 = vsel %vm357, %v349, 0
    %v386 = vsel %vm357, %v350, 0
    %v389 = vsel %vm357, %v351, 0
    %v392 = vsel %vm357, %v352, 0
    %v395 = vsel %vm357, %v353, 0
    %v398 = vsel %vm357, %v354, 0
    %v401 = vsel %vm357, %v355, 0
    %v404 = vsel %vm357, %v356, 0
    %v407 = vsel %vm357, %v45, 0
    %v410 = vsel %vm357, %v46, 0
    %v413 = vsel %vm357, %v47, 0
    %v416 = vsel %vm357, %v48, 0
    %v419 = vsel %vm357, %v49, 0
    %v422 = vsel %vm357, %v50, 0
    %v425 = vsel %vm357, %v51, 0
    %v428 = vsel %vm357, %v52, 0
    %430 = vmatprep.subr.bf16.mxu0 0
    %431 = vmatpush1.bf16.xpose.msra.mxu0 %v407
    %432 = vmatprep.subr.bf16.mxu0 0
    %433 = vmatpush1.bf16.xpose.msra.mxu0 %v410
    %434 = vmatprep.subr.bf16.mxu0 0
    %435 = vmatpush1.bf16.xpose.msra.mxu0 %v413
    %436 = vmatprep.subr.bf16.mxu0 0
    %437 = vmatpush1.bf16.xpose.msra.mxu0 %v416
    %438 = vmatprep.subr.bf16.mxu0 0
    %439 = vmatpush1.bf16.xpose.msra.mxu0 %v419
    %440 = vmatprep.subr.bf16.mxu0 0
    %441 = vmatpush1.bf16.xpose.msra.mxu0 %v422
    %442 = vmatprep.subr.bf16.mxu0 0
    %443 = vmatpush1.bf16.xpose.msra.mxu0 %v425
    %444 = vmatprep.subr.bf16.mxu0 0
    %445 = vmatpush1.bf16.xpose.msra.mxu0 %v428
    %446 = vmatprep.subr.bf16.mxu0 0
    %447 = vmatpush1.bf16.xpose.msra.mxu0 0
    %448 = vmatprep.subr.bf16.mxu0 0
    %449 = vmatpush1.bf16.xpose.msra.mxu0 0
    %450 = vmatprep.subr.bf16.mxu0 0
    %451 = vmatpush1.bf16.xpose.msra.mxu0 0
    %452 = vmatprep.subr.bf16.mxu0 0
    %453 = vmatpush1.bf16.xpose.msra.mxu0 0
    %454 = vmatprep.subr.bf16.mxu0 0
    %455 = vmatpush1.bf16.xpose.msra.mxu0 0
    %456 = vmatprep.subr.bf16.mxu0 0
    %457 = vmatpush1.bf16.xpose.msra.mxu0 0
    %458 = vmatprep.subr.bf16.mxu0 0
    %459 = vmatpush1.bf16.xpose.msra.mxu0 0
    %460 = vmatprep.subr.bf16.mxu0 0
    %461 = vmatpush1.bf16.xpose.msra.mxu0 0
    %462 = vmatprep.mubr.bf16.mxu0 0
    %463 = vmatmul.mubr.bf16.gmra.mrb[0].mxu0 %v359
    %v464 = vpop.f32.mrb[0].mxu0
    %v465 = vadd.f32 %v120, %v464
    %v466 = vpop.f32.mrb[0].mxu0
    %v467 = vpop.f32.mrb[0].mxu0
    %v468 = vadd.f32 %v125, %v467
    %v469 = vpop.f32.mrb[0].mxu0
    %470 = vmatprep.mubr.bf16.mxu0 0
    %471 = vmatmul.mubr.bf16.gmra.mrb[0].mxu0 %v362
    %v472 = vpop.f32.mrb[0].mxu0
    %v473 = vadd.f32 %v130, %v472
    %v474 = vpop.f32.mrb[0].mxu0
    %v475 = vpop.f32.mrb[0].mxu0
    %v476 = vadd.f32 %v135, %v475
    %v477 = vpop.f32.mrb[0].mxu0
    %478 = vmatprep.mubr.bf16.mxu0 0
    %479 = vmatmul.mubr.bf16.gmra.mrb[0].mxu0 %v365
    %v480 = vpop.f32.mrb[0].mxu0
    %v481 = vadd.f32 %v140, %v480
    %v482 = vpop.f32.mrb[0].mxu0
    %v483 = vpop.f32.mrb[0].mxu0
    %v484 = vadd.f32 %v145, %v483
    %v485 = vpop.f32.mrb[0].mxu0
    %486 = vmatprep.mubr.bf16.mxu0 0
    %487 = vmatmul.mubr.bf16.gmra.mrb[0].mxu0 %v368
    %v488 = vpop.f32.mrb[0].mxu0
    %v489 = vadd.f32 %v150, %v488
    %v490 = vpop.f32.mrb[0].mxu0
    %v491 = vpop.f32.mrb[0].mxu0
    %v492 = vadd.f32 %v155, %v491
    %v493 = vpop.f32.mrb[0].mxu0
    %494 = vmatprep.mubr.bf16.mxu0 0
    %495 = vmatmul.mubr.bf16.gmra.mrb[0].mxu0 %v371
    %v496 = vpop.f32.mrb[0].mxu0
    %v497 = vadd.f32 %v160, %v496
    %v498 = vpop.f32.mrb[0].mxu0
    %v499 = vpop.f32.mrb[0].mxu0
    %v500 = vadd.f32 %v165, %v499
    %v501 = vpop.f32.mrb[0].mxu0
    %502 = vmatprep.mubr.bf16.mxu0 0
    %503 = vmatmul.mubr.bf16.gmra.mrb[0].mxu0 %v374
    %v504 = vpop.f32.mrb[0].mxu0
    %v505 = vadd.f32 %v170, %v504
    %v506 = vpop.f32.mrb[0].mxu0
    %v507 = vpop.f32.mrb[0].mxu0
    %v508 = vadd.f32 %v175, %v507
    %v509 = vpop.f32.mrb[0].mxu0
    %510 = vmatprep.mubr.bf16.mxu0 0
    %511 = vmatmul.mubr.bf16.gmra.mrb[0].mxu0 %v377
    %v512 = vpop.f32.mrb[0].mxu0
    %v513 = vadd.f32 %v180, %v512
    %v514 = vpop.f32.mrb[0].mxu0
    %v515 = vpop.f32.mrb[0].mxu0
    %v516 = vadd.f32 %v185, %v515
    %v517 = vpop.f32.mrb[0].mxu0
    %518 = vmatprep.mubr.bf16.mxu0 0
    %519 = vmatmul.mubr.bf16.gmra.mrb[0].mxu0 %v380
    %v520 = vpop.f32.mrb[0].mxu0
    %v521 = vadd.f32 %v190, %v520
    %v522 = vpop.f32.mrb[0].mxu0
    %v523 = vpop.f32.mrb[0].mxu0
    %v524 = vadd.f32 %v195, %v523
    %v525 = vpop.f32.mrb[0].mxu0
    %526 = vmatprep.mubr.bf16.mxu0 0
    %527 = vmatmul.mubr.bf16.gmra.mrb[0].mxu0 %v383
    %v528 = vpop.f32.mrb[0].mxu0
    %v529 = vadd.f32 %v200, %v528
    %v530 = vpop.f32.mrb[0].mxu0
    %v531 = vpop.f32.mrb[0].mxu0
    %v532 = vadd.f32 %v205, %v531
    %v533 = vpop.f32.mrb[0].mxu0
    %534 = vmatprep.mubr.bf16.mxu0 0
    %535 = vmatmul.mubr.bf16.gmra.mrb[0].mxu0 %v386
    %v536 = vpop.f32.mrb[0].mxu0
    %v537 = vadd.f32 %v210, %v536
    %v538 = vpop.f32.mrb[0].mxu0
    %v539 = vpop.f32.mrb[0].mxu0
    %v540 = vadd.f32 %v215, %v539
    %v541 = vpop.f32.mrb[0].mxu0
    %542 = vmatprep.mubr.bf16.mxu0 0
    %543 = vmatmul.mubr.bf16.gmra.mrb[0].mxu0 %v389
    %v544 = vpop.f32.mrb[0].mxu0
    %v545 = vadd.f32 %v220, %v544
    %v546 = vpop.f32.mrb[0].mxu0
    %v547 = vpop.f32.mrb[0].mxu0
    %v548 = vadd.f32 %v225, %v547
    %v549 = vpop.f32.mrb[0].mxu0
    %550 = vmatprep.mubr.bf16.mxu0 0
    %551 = vmatmul.mubr.bf16.gmra.mrb[0].mxu0 %v392
    %v552 = vpop.f32.mrb[0].mxu0
    %v553 = vadd.f32 %v230, %v552
    %v554 = vpop.f32.mrb[0].mxu0
    %v555 = vpop.f32.mrb[0].mxu0
    %v556 = vadd.f32 %v235, %v555
    %v557 = vpop.f32.mrb[0].mxu0
    %558 = vmatprep.mubr.bf16.mxu0 0
    %559 = vmatmul.mubr.bf16.gmra.mrb[0].mxu0 %v395
    %v560 = vpop.f32.mrb[0].mxu0
    %v561 = vadd.f32 %v240, %v560
    %v562 = vpop.f32.mrb[0].mxu0
    %v563 = vpop.f32.mrb[0].mxu0
    %v564 = vadd.f32 %v245, %v563
    %v565 = vpop.f32.mrb[0].mxu0
    %566 = vmatprep.mubr.bf16.mxu0 0
    %567 = vmatmul.mubr.bf16.gmra.mrb[0].mxu0 %v398
    %v568 = vpop.f32.mrb[0].mxu0
    %v569 = vadd.f32 %v250, %v568
    %v570 = vpop.f32.mrb[0].mxu0
    %v571 = vpop.f32.mrb[0].mxu0
    %v572 = vadd.f32 %v255, %v571
    %v573 = vpop.f32.mrb[0].mxu0
    %574 = vmatprep.mubr.bf16.mxu0 0
    %575 = vmatmul.mubr.bf16.gmra.mrb[0].mxu0 %v401
    %v576 = vpop.f32.mrb[0].mxu0
    %v577 = vadd.f32 %v260, %v576
    %v578 = vpop.f32.mrb[0].mxu0
    %v579 = vpop.f32.mrb[0].mxu0
    %v580 = vadd.f32 %v265, %v579
    %v581 = vpop.f32.mrb[0].mxu0
    %582 = vmatprep.mubr.bf16.mxu0 0
    %583 = vmatmul.mubr.bf16.gmra.mrb[0].mxu0 %v404
    %v584 = vpop.f32.mrb[0].mxu0
    %v585 = vadd.f32 %v270, %v584
    %v586 = vpop.f32.mrb[0].mxu0
    %v587 = vpop.f32.mrb[0].mxu0
    %v588 = vadd.f32 %v275, %v587
    %v589 = vpop.f32.mrb[0].mxu0
    %590 = vdwg.mxu0
    %v591 = vmax.f32 %v465, 0.0
    %v592 = vmax.f32 %v468, 0.0
    %v593 = vmax.f32 %v473, 0.0
    %v594 = vmax.f32 %v476, 0.0
    %v595 = vmax.f32 %v481, 0.0
    %v596 = vmax.f32 %v484, 0.0
    %v597 = vmax.f32 %v489, 0.0
    %v598 = vmax.f32 %v492, 0.0
    %v599 = vmax.f32 %v497, 0.0
    %v600 = vmax.f32 %v500, 0.0
    %v601 = vmax.f32 %v505, 0.0
    %v602 = vmax.f32 %v508, 0.0
    %v603 = vmax.f32 %v513, 0.0
    %v604 = vmax.f32 %v516, 0.0
    %v605 = vmax.f32 %v521, 0.0
    %v606 = vmax.f32 %v524, 0.0
    %v607 = vmax.f32 %v529, 0.0
    %v608 = vmax.f32 %v532, 0.0
    %v609 = vmax.f32 %v537, 0.0
    %v610 = vmax.f32 %v540, 0.0
    %v611 = vmax.f32 %v545, 0.0
    %v612 = vmax.f32 %v548, 0.0
    %v613 = vmax.f32 %v553, 0.0
    %v614 = vmax.f32 %v556, 0.0
    %v615 = vmax.f32 %v561, 0.0
    %v616 = vmax.f32 %v564, 0.0
    %v617 = vmax.f32 %v569, 0.0
    %v618 = vmax.f32 %v572, 0.0
    %v619 = vmax.f32 %v577, 0.0
    %v620 = vmax.f32 %v580, 0.0
    %v621 = vmax.f32 %v585, 0.0
    %v622 = vmax.f32 %v588, 0.0
    %v623 = vld [vmem:[%s3] sm:$0xff]
    %v624 = vld [vmem:[%s3 + $0x8] sm:$0xff]
    %v625 = vld [vmem:[%s3 + $0x10] sm:$0xff]
    %v626 = vld [vmem:[%s3 + $0x18] sm:$0xff]
    %v627 = vld [vmem:[%s3 + $0x20] sm:$0xff]
    %v628 = vld [vmem:[%s3 + $0x28] sm:$0xff]
    %v629 = vld [vmem:[%s3 + $0x30] sm:$0xff]
    %v630 = vld [vmem:[%s3 + $0x38] sm:$0xff]
    %v631 = vld [vmem:[%s3 + $0x40] sm:$0xff]
    %v632 = vld [vmem:[%s3 + $0x48] sm:$0xff]
    %v633 = vld [vmem:[%s3 + $0x50] sm:$0xff]
    %v634 = vld [vmem:[%s3 + $0x58] sm:$0xff]
    %v635 = vld [vmem:[%s3 + $0x60] sm:$0xff]
    %v636 = vld [vmem:[%s3 + $0x68] sm:$0xff]
    %v637 = vld [vmem:[%s3 + $0x70] sm:$0xff]
    %v638 = vld [vmem:[%s3 + $0x78] sm:$0xff]
    %v639 = vld [vmem:[%s3 + $0x80] sm:$0xff]
    %v640 = vld [vmem:[%s3 + $0x88] sm:$0xff]
    %v641 = vld [vmem:[%s3 + $0x90] sm:$0xff]
    %v642 = vld [vmem:[%s3 + $0x98] sm:$0xff]
    %v643 = vld [vmem:[%s3 + $0xa0] sm:$0xff]
    %v644 = vld [vmem:[%s3 + $0xa8] sm:$0xff]
    %v645 = vld [vmem:[%s3 + $0xb0] sm:$0xff]
    %v646 = vld [vmem:[%s3 + $0xb8] sm:$0xff]
    %v647 = vld [vmem:[%s3 + $0xc0] sm:$0xff]
    %v648 = vld [vmem:[%s3 + $0xc8] sm:$0xff]
    %v649 = vld [vmem:[%s3 + $0xd0] sm:$0xff]
    %v650 = vld [vmem:[%s3 + $0xd8] sm:$0xff]
    %v651 = vld [vmem:[%s3 + $0xe0] sm:$0xff]
    %v652 = vld [vmem:[%s3 + $0xe8] sm:$0xff]
    %v653 = vld [vmem:[%s3 + $0xf0] sm:$0xff]
    %v654 = vld [vmem:[%s3 + $0xf8] sm:$0xff]
    %v655 = vpack.c.bf16 %v592, %v591
    %v656 = vpack.c.bf16 %v594, %v593
    %v657 = vpack.c.bf16 %v596, %v595
    %v658 = vpack.c.bf16 %v598, %v597
    %v659 = vpack.c.bf16 %v600, %v599
    %v660 = vpack.c.bf16 %v602, %v601
    %v661 = vpack.c.bf16 %v604, %v603
    %v662 = vpack.c.bf16 %v606, %v605
    %v663 = vpack.c.bf16 %v608, %v607
    %v664 = vpack.c.bf16 %v610, %v609
    %v665 = vpack.c.bf16 %v612, %v611
    %v666 = vpack.c.bf16 %v614, %v613
    %v667 = vpack.c.bf16 %v616, %v615
    %v668 = vpack.c.bf16 %v618, %v617
    %v669 = vpack.c.bf16 %v620, %v619
    %v670 = vpack.c.bf16 %v622, %v621
    %v671 = vld [vmem:[%s4] sm:$0xff]
    %v672 = vld [vmem:[%s4 + $0x8] sm:$0xff]
    %v673 = vld [vmem:[%s4 + $0x10] sm:$0xff]
    %v674 = vld [vmem:[%s4 + $0x18] sm:$0xff]
    %v675 = vld [vmem:[%s4 + $0x20] sm:$0xff]
    %v676 = vld [vmem:[%s4 + $0x28] sm:$0xff]
    %v677 = vld [vmem:[%s4 + $0x30] sm:$0xff]
    %v678 = vld [vmem:[%s4 + $0x38] sm:$0xff]
    %v679 = vld [vmem:[%s4 + $0x40] sm:$0xff]
    %v680 = vld [vmem:[%s4 + $0x48] sm:$0xff]
    %v681 = vld [vmem:[%s4 + $0x50] sm:$0xff]
    %v682 = vld [vmem:[%s4 + $0x58] sm:$0xff]
    %v683 = vld [vmem:[%s4 + $0x60] sm:$0xff]
    %v684 = vld [vmem:[%s4 + $0x68] sm:$0xff]
    %v685 = vld [vmem:[%s4 + $0x70] sm:$0xff]
    %v686 = vld [vmem:[%s4 + $0x78] sm:$0xff]
    %v687 = vld [vmem:[%s4 + $0x80] sm:$0xff]
    %v688 = vld [vmem:[%s4 + $0x88] sm:$0xff]
    %v689 = vld [vmem:[%s4 + $0x90] sm:$0xff]
    %v690 = vld [vmem:[%s4 + $0x98] sm:$0xff]
    %v691 = vld [vmem:[%s4 + $0xa0] sm:$0xff]
    %v692 = vld [vmem:[%s4 + $0xa8] sm:$0xff]
    %v693 = vld [vmem:[%s4 + $0xb0] sm:$0xff]
    %v694 = vld [vmem:[%s4 + $0xb8] sm:$0xff]
    %v695 = vld [vmem:[%s4 + $0xc0] sm:$0xff]
    %v696 = vld [vmem:[%s4 + $0xc8] sm:$0xff]
    %v697 = vld [vmem:[%s4 + $0xd0] sm:$0xff]
    %v698 = vld [vmem:[%s4 + $0xd8] sm:$0xff]
    %v699 = vld [vmem:[%s4 + $0xe0] sm:$0xff]
    %v700 = vld [vmem:[%s4 + $0xe8] sm:$0xff]
    %v701 = vld [vmem:[%s4 + $0xf0] sm:$0xff]
    %v702 = vld [vmem:[%s4 + $0xf8] sm:$0xff]
    %704 = vset.pattern.permute.xlu0 0
    %705 = vperm.xlu0 %704, %v671
    %v706 = vpop.permute.xlu0 %705
    %709 = vset.pattern.permute.xlu0 0
    %710 = vperm.xlu0 %709, %v672
    %v711 = vpop.permute.xlu0 %710
    %714 = vset.pattern.permute.xlu0 0
    %715 = vperm.xlu0 %714, %v673
    %v716 = vpop.permute.xlu0 %715
    %719 = vset.pattern.permute.xlu0 0
    %720 = vperm.xlu0 %719, %v674
    %v721 = vpop.permute.xlu0 %720
    %724 = vset.pattern.permute.xlu0 0
    %725 = vperm.xlu0 %724, %v675
    %v726 = vpop.permute.xlu0 %725
    %729 = vset.pattern.permute.xlu0 0
    %730 = vperm.xlu0 %729, %v676
    %v731 = vpop.permute.xlu0 %730
    %734 = vset.pattern.permute.xlu0 0
    %735 = vperm.xlu0 %734, %v677
    %v736 = vpop.permute.xlu0 %735
    %739 = vset.pattern.permute.xlu0 0
    %740 = vperm.xlu0 %739, %v678
    %v741 = vpop.permute.xlu0 %740
    %744 = vset.pattern.permute.xlu0 0
    %745 = vperm.xlu0 %744, %v679
    %v746 = vpop.permute.xlu0 %745
    %749 = vset.pattern.permute.xlu0 0
    %750 = vperm.xlu0 %749, %v680
    %v751 = vpop.permute.xlu0 %750
    %754 = vset.pattern.permute.xlu0 0
    %755 = vperm.xlu0 %754, %v681
    %v756 = vpop.permute.xlu0 %755
    %759 = vset.pattern.permute.xlu0 0
    %760 = vperm.xlu0 %759, %v682
    %v761 = vpop.permute.xlu0 %760
    %764 = vset.pattern.permute.xlu0 0
    %765 = vperm.xlu0 %764, %v683
    %v766 = vpop.permute.xlu0 %765
    %769 = vset.pattern.permute.xlu0 0
    %770 = vperm.xlu0 %769, %v684
    %v771 = vpop.permute.xlu0 %770
    %774 = vset.pattern.permute.xlu0 0
    %775 = vperm.xlu0 %774, %v685
    %v776 = vpop.permute.xlu0 %775
    %779 = vset.pattern.permute.xlu0 0
    %780 = vperm.xlu0 %779, %v686
    %v781 = vpop.permute.xlu0 %780
    %784 = vset.pattern.permute.xlu0 0
    %785 = vperm.xlu0 %784, %v687
    %v786 = vpop.permute.xlu0 %785
    %789 = vset.pattern.permute.xlu0 0
    %790 = vperm.xlu0 %789, %v688
    %v791 = vpop.permute.xlu0 %790
    %794 = vset.pattern.permute.xlu0 0
    %795 = vperm.xlu0 %794, %v689
    %v796 = vpop.permute.xlu0 %795
    %799 = vset.pattern.permute.xlu0 0
    %800 = vperm.xlu0 %799, %v690
    %v801 = vpop.permute.xlu0 %800
    %804 = vset.pattern.permute.xlu0 0
    %805 = vperm.xlu0 %804, %v691
    %v806 = vpop.permute.xlu0 %805
    %809 = vset.pattern.permute.xlu0 0
    %810 = vperm.xlu0 %809, %v692
    %v811 = vpop.permute.xlu0 %810
    %814 = vset.pattern.permute.xlu0 0
    %815 = vperm.xlu0 %814, %v693
    %v816 = vpop.permute.xlu0 %815
    %819 = vset.pattern.permute.xlu0 0
    %820 = vperm.xlu0 %819, %v694
    %v821 = vpop.permute.xlu0 %820
    %824 = vset.pattern.permute.xlu0 0
    %825 = vperm.xlu0 %824, %v695
    %v826 = vpop.permute.xlu0 %825
    %829 = vset.pattern.permute.xlu0 0
    %830 = vperm.xlu0 %829, %v696
    %v831 = vpop.permute.xlu0 %830
    %834 = vset.pattern.permute.xlu0 0
    %835 = vperm.xlu0 %834, %v697
    %v836 = vpop.permute.xlu0 %835
    %839 = vset.pattern.permute.xlu0 0
    %840 = vperm.xlu0 %839, %v698
    %v841 = vpop.permute.xlu0 %840
    %844 = vset.pattern.permute.xlu0 0
    %845 = vperm.xlu0 %844, %v699
    %v846 = vpop.permute.xlu0 %845
    %849 = vset.pattern.permute.xlu0 0
    %850 = vperm.xlu0 %849, %v700
    %v851 = vpop.permute.xlu0 %850
    %854 = vset.pattern.permute.xlu0 0
    %855 = vperm.xlu0 %854, %v701
    %v856 = vpop.permute.xlu0 %855
    %859 = vset.pattern.permute.xlu0 0
    %860 = vperm.xlu0 %859, %v702
    %v861 = vpop.permute.xlu0 %860
    %v895 = vunpack.c.l.b16 %v623
    %v896 = vunpack.c.h.b16 %v623
    %v897 = vunpack.c.l.b16 %v624
    %v898 = vunpack.c.h.b16 %v624
    %v899 = vunpack.c.l.b16 %v625
    %v900 = vunpack.c.h.b16 %v625
    %v901 = vunpack.c.l.b16 %v626
    %v902 = vunpack.c.h.b16 %v626
    %v903 = vunpack.c.l.b16 %v627
    %v904 = vunpack.c.h.b16 %v627
    %v905 = vunpack.c.l.b16 %v628
    %v906 = vunpack.c.h.b16 %v628
    %v907 = vunpack.c.l.b16 %v629
    %v908 = vunpack.c.h.b16 %v629
    %v909 = vunpack.c.l.b16 %v630
    %v910 = vunpack.c.h.b16 %v630
    %v911 = vunpack.c.l.b16 %v631
    %v912 = vunpack.c.h.b16 %v631
    %v913 = vunpack.c.l.b16 %v632
    %v914 = vunpack.c.h.b16 %v632
    %v915 = vunpack.c.l.b16 %v633
    %v916 = vunpack.c.h.b16 %v633
    %v917 = vunpack.c.l.b16 %v634
    %v918 = vunpack.c.h.b16 %v634
    %v919 = vunpack.c.l.b16 %v635
    %v920 = vunpack.c.h.b16 %v635
    %v921 = vunpack.c.l.b16 %v636
    %v922 = vunpack.c.h.b16 %v636
    %v923 = vunpack.c.l.b16 %v637
    %v924 = vunpack.c.h.b16 %v637
    %v925 = vunpack.c.l.b16 %v638
    %v926 = vunpack.c.h.b16 %v638
    %v927 = vunpack.c.l.b16 %v639
    %v928 = vunpack.c.h.b16 %v639
    %v929 = vunpack.c.l.b16 %v640
    %v930 = vunpack.c.h.b16 %v640
    %v931 = vunpack.c.l.b16 %v641
    %v932 = vunpack.c.h.b16 %v641
    %v933 = vunpack.c.l.b16 %v642
    %v934 = vunpack.c.h.b16 %v642
    %v935 = vunpack.c.l.b16 %v643
    %v936 = vunpack.c.h.b16 %v643
    %v937 = vunpack.c.l.b16 %v644
    %v938 = vunpack.c.h.b16 %v644
    %v939 = vunpack.c.l.b16 %v645
    %v940 = vunpack.c.h.b16 %v645
    %v941 = vunpack.c.l.b16 %v646
    %v942 = vunpack.c.h.b16 %v646
    %v943 = vunpack.c.l.b16 %v647
    %v944 = vunpack.c.h.b16 %v647
    %v945 = vunpack.c.l.b16 %v648
    %v946 = vunpack.c.h.b16 %v648
    %v947 = vunpack.c.l.b16 %v649
    %v948 = vunpack.c.h.b16 %v649
    %v949 = vunpack.c.l.b16 %v650
    %v950 = vunpack.c.h.b16 %v650
    %v951 = vunpack.c.l.b16 %v651
    %v952 = vunpack.c.h.b16 %v651
    %v953 = vunpack.c.l.b16 %v652
    %v954 = vunpack.c.h.b16 %v652
    %v955 = vunpack.c.l.b16 %v653
    %v956 = vunpack.c.h.b16 %v653
    %v957 = vunpack.c.l.b16 %v654
    %v958 = vunpack.c.h.b16 %v654
    %v959 = vpack.c.b16 %v897, %v895
    %v960 = vpack.c.b16 %v898, %v896
    %v961 = vpack.c.b16 %v901, %v899
    %v962 = vpack.c.b16 %v902, %v900
    %v963 = vpack.c.b16 %v905, %v903
    %v964 = vpack.c.b16 %v906, %v904
    %v965 = vpack.c.b16 %v909, %v907
    %v966 = vpack.c.b16 %v910, %v908
    %v967 = vpack.c.b16 %v913, %v911
    %v968 = vpack.c.b16 %v914, %v912
    %v969 = vpack.c.b16 %v917, %v915
    %v970 = vpack.c.b16 %v918, %v916
    %v971 = vpack.c.b16 %v921, %v919
    %v972 = vpack.c.b16 %v922, %v920
    %v973 = vpack.c.b16 %v925, %v923
    %v974 = vpack.c.b16 %v926, %v924
    %v975 = vpack.c.b16 %v929, %v927
    %v976 = vpack.c.b16 %v930, %v928
    %v977 = vpack.c.b16 %v933, %v931
    %v978 = vpack.c.b16 %v934, %v932
    %v979 = vpack.c.b16 %v937, %v935
    %v980 = vpack.c.b16 %v938, %v936
    %v981 = vpack.c.b16 %v941, %v939
    %v982 = vpack.c.b16 %v942, %v940
    %v983 = vpack.c.b16 %v945, %v943
    %v984 = vpack.c.b16 %v946, %v944
    %v985 = vpack.c.b16 %v949, %v947
    %v986 = vpack.c.b16 %v950, %v948
    %v987 = vpack.c.b16 %v953, %v951
    %v988 = vpack.c.b16 %v954, %v952
    %v989 = vpack.c.b16 %v957, %v955
    %v990 = vpack.c.b16 %v958, %v956
    %1023 = vmatprep.subr.bf16.mxu0 0
    %1024 = vmatpush1.bf16.msra.mxu0 %v655
    %1025 = vmatprep.subr.bf16.mxu0 0
    %1026 = vmatpush1.bf16.msra.mxu0 %v656
    %1027 = vmatprep.subr.bf16.mxu0 0
    %1028 = vmatpush1.bf16.msra.mxu0 %v657
    %1029 = vmatprep.subr.bf16.mxu0 0
    %1030 = vmatpush1.bf16.msra.mxu0 %v658
    %1031 = vmatprep.subr.bf16.mxu0 0
    %1032 = vmatpush1.bf16.msra.mxu0 %v659
    %1033 = vmatprep.subr.bf16.mxu0 0
    %1034 = vmatpush1.bf16.msra.mxu0 %v660
    %1035 = vmatprep.subr.bf16.mxu0 0
    %1036 = vmatpush1.bf16.msra.mxu0 %v661
    %1037 = vmatprep.subr.bf16.mxu0 0
    %1038 = vmatpush1.bf16.msra.mxu0 %v662
    %1039 = vmatprep.subr.bf16.mxu0 0
    %1040 = vmatpush1.bf16.msra.mxu0 %v663
    %1041 = vmatprep.subr.bf16.mxu0 0
    %1042 = vmatpush1.bf16.msra.mxu0 %v664
    %1043 = vmatprep.subr.bf16.mxu0 0
    %1044 = vmatpush1.bf16.msra.mxu0 %v665
    %1045 = vmatprep.subr.bf16.mxu0 0
    %1046 = vmatpush1.bf16.msra.mxu0 %v666
    %1047 = vmatprep.subr.bf16.mxu0 0
    %1048 = vmatpush1.bf16.msra.mxu0 %v667
    %1049 = vmatprep.subr.bf16.mxu0 0
    %1050 = vmatpush1.bf16.msra.mxu0 %v668
    %1051 = vmatprep.subr.bf16.mxu0 0
    %1052 = vmatpush1.bf16.msra.mxu0 %v669
    %1053 = vmatprep.subr.bf16.mxu0 0
    %1054 = vmatpush1.bf16.msra.mxu0 %v670
    %1055 = vmatprep.mubr.bf16.mxu0 %v960
    %1056 = vmatmul.mubr.bf16.gmra.mrb[0].mxu0 %v959
    %v1057 = vpop.f32.mrb[0].mxu0
    %v1058 = vadd.f32 %v706, %v1057
    %v1059 = vpop.f32.mrb[0].mxu0
    %v1060 = vpop.f32.mrb[0].mxu0
    %v1061 = vadd.f32 %v711, %v1060
    %v1062 = vpop.f32.mrb[0].mxu0
    %1063 = vmatprep.mubr.bf16.mxu0 %v962
    %1064 = vmatmul.mubr.bf16.gmra.mrb[0].mxu0 %v961
    %v1065 = vpop.f32.mrb[0].mxu0
    %v1066 = vadd.f32 %v716, %v1065
    %v1067 = vpop.f32.mrb[0].mxu0
    %v1068 = vpop.f32.mrb[0].mxu0
    %v1069 = vadd.f32 %v721, %v1068
    %v1070 = vpop.f32.mrb[0].mxu0
    %1071 = vmatprep.mubr.bf16.mxu0 %v964
    %1072 = vmatmul.mubr.bf16.gmra.mrb[0].mxu0 %v963
    %v1073 = vpop.f32.mrb[0].mxu0
    %v1074 = vadd.f32 %v726, %v1073
    %v1075 = vpop.f32.mrb[0].mxu0
    %v1076 = vpop.f32.mrb[0].mxu0
    %v1077 = vadd.f32 %v731, %v1076
    %v1078 = vpop.f32.mrb[0].mxu0
    %1079 = vmatprep.mubr.bf16.mxu0 %v966
    %1080 = vmatmul.mubr.bf16.gmra.mrb[0].mxu0 %v965
    %v1081 = vpop.f32.mrb[0].mxu0
    %v1082 = vadd.f32 %v736, %v1081
    %v1083 = vpop.f32.mrb[0].mxu0
    %v1084 = vpop.f32.mrb[0].mxu0
    %v1085 = vadd.f32 %v741, %v1084
    %v1086 = vpop.f32.mrb[0].mxu0
    %1087 = vmatprep.mubr.bf16.mxu0 %v968
    %1088 = vmatmul.mubr.bf16.gmra.mrb[0].mxu0 %v967
    %v1089 = vpop.f32.mrb[0].mxu0
    %v1090 = vadd.f32 %v746, %v1089
    %v1091 = vpop.f32.mrb[0].mxu0
    %v1092 = vpop.f32.mrb[0].mxu0
    %v1093 = vadd.f32 %v751, %v1092
    %v1094 = vpop.f32.mrb[0].mxu0
    %1095 = vmatprep.mubr.bf16.mxu0 %v970
    %1096 = vmatmul.mubr.bf16.gmra.mrb[0].mxu0 %v969
    %v1097 = vpop.f32.mrb[0].mxu0
    %v1098 = vadd.f32 %v756, %v1097
    %v1099 = vpop.f32.mrb[0].mxu0
    %v1100 = vpop.f32.mrb[0].mxu0
    %v1101 = vadd.f32 %v761, %v1100
    %v1102 = vpop.f32.mrb[0].mxu0
    %1103 = vmatprep.mubr.bf16.mxu0 %v972
    %1104 = vmatmul.mubr.bf16.gmra.mrb[0].mxu0 %v971
    %v1105 = vpop.f32.mrb[0].mxu0
    %v1106 = vadd.f32 %v766, %v1105
    %v1107 = vpop.f32.mrb[0].mxu0
    %v1108 = vpop.f32.mrb[0].mxu0
    %v1109 = vadd.f32 %v771, %v1108
    %v1110 = vpop.f32.mrb[0].mxu0
    %1111 = vmatprep.mubr.bf16.mxu0 %v974
    %1112 = vmatmul.mubr.bf16.gmra.mrb[0].mxu0 %v973
    %v1113 = vpop.f32.mrb[0].mxu0
    %v1114 = vadd.f32 %v776, %v1113
    %v1115 = vpop.f32.mrb[0].mxu0
    %v1116 = vpop.f32.mrb[0].mxu0
    %v1117 = vadd.f32 %v781, %v1116
    %v1118 = vpop.f32.mrb[0].mxu0
    %1119 = vmatprep.mubr.bf16.mxu0 %v976
    %1120 = vmatmul.mubr.bf16.gmra.mrb[0].mxu0 %v975
    %v1121 = vpop.f32.mrb[0].mxu0
    %v1122 = vadd.f32 %v786, %v1121
    %v1123 = vpop.f32.mrb[0].mxu0
    %v1124 = vpop.f32.mrb[0].mxu0
    %v1125 = vadd.f32 %v791, %v1124
    %v1126 = vpop.f32.mrb[0].mxu0
    %1127 = vmatprep.mubr.bf16.mxu0 %v978
    %1128 = vmatmul.mubr.bf16.gmra.mrb[0].mxu0 %v977
    %v1129 = vpop.f32.mrb[0].mxu0
    %v1130 = vadd.f32 %v796, %v1129
    %v1131 = vpop.f32.mrb[0].mxu0
    %v1132 = vpop.f32.mrb[0].mxu0
    %v1133 = vadd.f32 %v801, %v1132
    %v1134 = vpop.f32.mrb[0].mxu0
    %1135 = vmatprep.mubr.bf16.mxu0 %v980
    %1136 = vmatmul.mubr.bf16.gmra.mrb[0].mxu0 %v979
    %v1137 = vpop.f32.mrb[0].mxu0
    %v1138 = vadd.f32 %v806, %v1137
    %v1139 = vpop.f32.mrb[0].mxu0
    %v1140 = vpop.f32.mrb[0].mxu0
    %v1141 = vadd.f32 %v811, %v1140
    %v1142 = vpop.f32.mrb[0].mxu0
    %1143 = vmatprep.mubr.bf16.mxu0 %v982
    %1144 = vmatmul.mubr.bf16.gmra.mrb[0].mxu0 %v981
    %v1145 = vpop.f32.mrb[0].mxu0
    %v1146 = vadd.f32 %v816, %v1145
    %v1147 = vpop.f32.mrb[0].mxu0
    %v1148 = vpop.f32.mrb[0].mxu0
    %v1149 = vadd.f32 %v821, %v1148
    %v1150 = vpop.f32.mrb[0].mxu0
    %1151 = vmatprep.mubr.bf16.mxu0 %v984
    %1152 = vmatmul.mubr.bf16.gmra.mrb[0].mxu0 %v983
    %v1153 = vpop.f32.mrb[0].mxu0
    %v1154 = vadd.f32 %v826, %v1153
    %v1155 = vpop.f32.mrb[0].mxu0
    %v1156 = vpop.f32.mrb[0].mxu0
    %v1157 = vadd.f32 %v831, %v1156
    %v1158 = vpop.f32.mrb[0].mxu0
    %1159 = vmatprep.mubr.bf16.mxu0 %v986
    %1160 = vmatmul.mubr.bf16.gmra.mrb[0].mxu0 %v985
    %v1161 = vpop.f32.mrb[0].mxu0
    %v1162 = vadd.f32 %v836, %v1161
    %v1163 = vpop.f32.mrb[0].mxu0
    %v1164 = vpop.f32.mrb[0].mxu0
    %v1165 = vadd.f32 %v841, %v1164
    %v1166 = vpop.f32.mrb[0].mxu0
    %1167 = vmatprep.mubr.bf16.mxu0 %v988
    %1168 = vmatmul.mubr.bf16.gmra.mrb[0].mxu0 %v987
    %v1169 = vpop.f32.mrb[0].mxu0
    %v1170 = vadd.f32 %v846, %v1169
    %v1171 = vpop.f32.mrb[0].mxu0
    %v1172 = vpop.f32.mrb[0].mxu0
    %v1173 = vadd.f32 %v851, %v1172
    %v1174 = vpop.f32.mrb[0].mxu0
    %1175 = vmatprep.mubr.bf16.mxu0 %v990
    %1176 = vmatmul.mubr.bf16.gmra.mrb[0].mxu0 %v989
    %v1177 = vpop.f32.mrb[0].mxu0
    %v1178 = vadd.f32 %v856, %v1177
    %v1179 = vpop.f32.mrb[0].mxu0
    %v1180 = vpop.f32.mrb[0].mxu0
    %v1181 = vadd.f32 %v861, %v1180
    %v1182 = vpop.f32.mrb[0].mxu0
    %1183 = vdwg.mxu0
    %v1184 = vmax.f32 %v1058, 0.0
    %v1185 = vmax.f32 %v1061, 0.0
    %v1186 = vmax.f32 %v1066, 0.0
    %v1187 = vmax.f32 %v1069, 0.0
    %v1188 = vmax.f32 %v1074, 0.0
    %v1189 = vmax.f32 %v1077, 0.0
    %v1190 = vmax.f32 %v1082, 0.0
    %v1191 = vmax.f32 %v1085, 0.0
    %v1192 = vmax.f32 %v1090, 0.0
    %v1193 = vmax.f32 %v1093, 0.0
    %v1194 = vmax.f32 %v1098, 0.0
    %v1195 = vmax.f32 %v1101, 0.0
    %v1196 = vmax.f32 %v1106, 0.0
    %v1197 = vmax.f32 %v1109, 0.0
    %v1198 = vmax.f32 %v1114, 0.0
    %v1199 = vmax.f32 %v1117, 0.0
    %v1200 = vmax.f32 %v1122, 0.0
    %v1201 = vmax.f32 %v1125, 0.0
    %v1202 = vmax.f32 %v1130, 0.0
    %v1203 = vmax.f32 %v1133, 0.0
    %v1204 = vmax.f32 %v1138, 0.0
    %v1205 = vmax.f32 %v1141, 0.0
    %v1206 = vmax.f32 %v1146, 0.0
    %v1207 = vmax.f32 %v1149, 0.0
    %v1208 = vmax.f32 %v1154, 0.0
    %v1209 = vmax.f32 %v1157, 0.0
    %v1210 = vmax.f32 %v1162, 0.0
    %v1211 = vmax.f32 %v1165, 0.0
    %v1212 = vmax.f32 %v1170, 0.0
    %v1213 = vmax.f32 %v1173, 0.0
    %v1214 = vmax.f32 %v1178, 0.0
    %v1215 = vmax.f32 %v1181, 0.0
    %v1216 = vld [vmem:[%s5] sm:$0xff]
    %v1217 = vld [vmem:[%s5 + $0x8] sm:$0xff]
    %v1218 = vld [vmem:[%s5 + $0x10] sm:$0xff]
    %v1219 = vld [vmem:[%s5 + $0x18] sm:$0xff]
    %v1220 = vld [vmem:[%s5 + $0x20] sm:$0xff]
    %v1221 = vld [vmem:[%s5 + $0x28] sm:$0xff]
    %v1222 = vld [vmem:[%s5 + $0x30] sm:$0xff]
    %v1223 = vld [vmem:[%s5 + $0x38] sm:$0xff]
    %v1224 = vld [vmem:[%s5 + $0x40] sm:$0xff]
    %v1225 = vld [vmem:[%s5 + $0x48] sm:$0xff]
    %v1226 = vld [vmem:[%s5 + $0x50] sm:$0xff]
    %v1227 = vld [vmem:[%s5 + $0x58] sm:$0xff]
    %v1228 = vld [vmem:[%s5 + $0x60] sm:$0xff]
    %v1229 = vld [vmem:[%s5 + $0x68] sm:$0xff]
    %v1230 = vld [vmem:[%s5 + $0x70] sm:$0xff]
    %v1231 = vld [vmem:[%s5 + $0x78] sm:$0xff]
    %v1232 = vld [vmem:[%s5 + $0x80] sm:$0xff]
    %v1233 = vld [vmem:[%s5 + $0x88] sm:$0xff]
    %v1234 = vld [vmem:[%s5 + $0x90] sm:$0xff]
    %v1235 = vld [vmem:[%s5 + $0x98] sm:$0xff]
    %v1236 = vld [vmem:[%s5 + $0xa0] sm:$0xff]
    %v1237 = vld [vmem:[%s5 + $0xa8] sm:$0xff]
    %v1238 = vld [vmem:[%s5 + $0xb0] sm:$0xff]
    %v1239 = vld [vmem:[%s5 + $0xb8] sm:$0xff]
    %v1240 = vld [vmem:[%s5 + $0xc0] sm:$0xff]
    %v1241 = vld [vmem:[%s5 + $0xc8] sm:$0xff]
    %v1242 = vld [vmem:[%s5 + $0xd0] sm:$0xff]
    %v1243 = vld [vmem:[%s5 + $0xd8] sm:$0xff]
    %v1244 = vld [vmem:[%s5 + $0xe0] sm:$0xff]
    %v1245 = vld [vmem:[%s5 + $0xe8] sm:$0xff]
    %v1246 = vld [vmem:[%s5 + $0xf0] sm:$0xff]
    %v1247 = vld [vmem:[%s5 + $0xf8] sm:$0xff]
    %1249 = vset.pattern.permute.xlu0 0
    %1250 = vperm.xlu0 %1249, %v1216
    %v1251 = vpop.permute.xlu0 %1250
    %1254 = vset.pattern.permute.xlu0 0
    %1255 = vperm.xlu0 %1254, %v1217
    %v1256 = vpop.permute.xlu0 %1255
    %1259 = vset.pattern.permute.xlu0 0
    %1260 = vperm.xlu0 %1259, %v1218
    %v1261 = vpop.permute.xlu0 %1260
    %1264 = vset.pattern.permute.xlu0 0
    %1265 = vperm.xlu0 %1264, %v1219
    %v1266 = vpop.permute.xlu0 %1265
    %1269 = vset.pattern.permute.xlu0 0
    %1270 = vperm.xlu0 %1269, %v1220
    %v1271 = vpop.permute.xlu0 %1270
    %1274 = vset.pattern.permute.xlu0 0
    %1275 = vperm.xlu0 %1274, %v1221
    %v1276 = vpop.permute.xlu0 %1275
    %1279 = vset.pattern.permute.xlu0 0
    %1280 = vperm.xlu0 %1279, %v1222
    %v1281 = vpop.permute.xlu0 %1280
    %1284 = vset.pattern.permute.xlu0 0
    %1285 = vperm.xlu0 %1284, %v1223
    %v1286 = vpop.permute.xlu0 %1285
    %1289 = vset.pattern.permute.xlu0 0
    %1290 = vperm.xlu0 %1289, %v1224
    %v1291 = vpop.permute.xlu0 %1290
    %1294 = vset.pattern.permute.xlu0 0
    %1295 = vperm.xlu0 %1294, %v1225
    %v1296 = vpop.permute.xlu0 %1295
    %1299 = vset.pattern.permute.xlu0 0
    %1300 = vperm.xlu0 %1299, %v1226
    %v1301 = vpop.permute.xlu0 %1300
    %1304 = vset.pattern.permute.xlu0 0
    %1305 = vperm.xlu0 %1304, %v1227
    %v1306 = vpop.permute.xlu0 %1305
    %1309 = vset.pattern.permute.xlu0 0
    %1310 = vperm.xlu0 %1309, %v1228
    %v1311 = vpop.permute.xlu0 %1310
    %1314 = vset.pattern.permute.xlu0 0
    %1315 = vperm.xlu0 %1314, %v1229
    %v1316 = vpop.permute.xlu0 %1315
    %1319 = vset.pattern.permute.xlu0 0
    %1320 = vperm.xlu0 %1319, %v1230
    %v1321 = vpop.permute.xlu0 %1320
    %1324 = vset.pattern.permute.xlu0 0
    %1325 = vperm.xlu0 %1324, %v1231
    %v1326 = vpop.permute.xlu0 %1325
    %1329 = vset.pattern.permute.xlu0 0
    %1330 = vperm.xlu0 %1329, %v1232
    %v1331 = vpop.permute.xlu0 %1330
    %1334 = vset.pattern.permute.xlu0 0
    %1335 = vperm.xlu0 %1334, %v1233
    %v1336 = vpop.permute.xlu0 %1335
    %1339 = vset.pattern.permute.xlu0 0
    %1340 = vperm.xlu0 %1339, %v1234
    %v1341 = vpop.permute.xlu0 %1340
    %1344 = vset.pattern.permute.xlu0 0
    %1345 = vperm.xlu0 %1344, %v1235
    %v1346 = vpop.permute.xlu0 %1345
    %1349 = vset.pattern.permute.xlu0 0
    %1350 = vperm.xlu0 %1349, %v1236
    %v1351 = vpop.permute.xlu0 %1350
    %1354 = vset.pattern.permute.xlu0 0
    %1355 = vperm.xlu0 %1354, %v1237
    %v1356 = vpop.permute.xlu0 %1355
    %1359 = vset.pattern.permute.xlu0 0
    %1360 = vperm.xlu0 %1359, %v1238
    %v1361 = vpop.permute.xlu0 %1360
    %1364 = vset.pattern.permute.xlu0 0
    %1365 = vperm.xlu0 %1364, %v1239
    %v1366 = vpop.permute.xlu0 %1365
    %1369 = vset.pattern.permute.xlu0 0
    %1370 = vperm.xlu0 %1369, %v1240
    %v1371 = vpop.permute.xlu0 %1370
    %1374 = vset.pattern.permute.xlu0 0
    %1375 = vperm.xlu0 %1374, %v1241
    %v1376 = vpop.permute.xlu0 %1375
    %1379 = vset.pattern.permute.xlu0 0
    %1380 = vperm.xlu0 %1379, %v1242
    %v1381 = vpop.permute.xlu0 %1380
    %1384 = vset.pattern.permute.xlu0 0
    %1385 = vperm.xlu0 %1384, %v1243
    %v1386 = vpop.permute.xlu0 %1385
    %1389 = vset.pattern.permute.xlu0 0
    %1390 = vperm.xlu0 %1389, %v1244
    %v1391 = vpop.permute.xlu0 %1390
    %1394 = vset.pattern.permute.xlu0 0
    %1395 = vperm.xlu0 %1394, %v1245
    %v1396 = vpop.permute.xlu0 %1395
    %1399 = vset.pattern.permute.xlu0 0
    %1400 = vperm.xlu0 %1399, %v1246
    %v1401 = vpop.permute.xlu0 %1400
    %1404 = vset.pattern.permute.xlu0 0
    %1405 = vperm.xlu0 %1404, %v1247
    %v1406 = vpop.permute.xlu0 %1405
    %v1408 = vmul.f32 %v1184, %v1251
    %v1409 = vmul.f32 %v1185, %v1256
    %v1410 = vmul.f32 %v1186, %v1261
    %v1411 = vmul.f32 %v1187, %v1266
    %v1412 = vmul.f32 %v1188, %v1271
    %v1413 = vmul.f32 %v1189, %v1276
    %v1414 = vmul.f32 %v1190, %v1281
    %v1415 = vmul.f32 %v1191, %v1286
    %v1416 = vmul.f32 %v1192, %v1291
    %v1417 = vmul.f32 %v1193, %v1296
    %v1418 = vmul.f32 %v1194, %v1301
    %v1419 = vmul.f32 %v1195, %v1306
    %v1420 = vmul.f32 %v1196, %v1311
    %v1421 = vmul.f32 %v1197, %v1316
    %v1422 = vmul.f32 %v1198, %v1321
    %v1423 = vmul.f32 %v1199, %v1326
    %v1424 = vmul.f32 %v1200, %v1331
    %v1425 = vmul.f32 %v1201, %v1336
    %v1426 = vmul.f32 %v1202, %v1341
    %v1427 = vmul.f32 %v1203, %v1346
    %v1428 = vmul.f32 %v1204, %v1351
    %v1429 = vmul.f32 %v1205, %v1356
    %v1430 = vmul.f32 %v1206, %v1361
    %v1431 = vmul.f32 %v1207, %v1366
    %v1432 = vmul.f32 %v1208, %v1371
    %v1433 = vmul.f32 %v1209, %v1376
    %v1434 = vmul.f32 %v1210, %v1381
    %v1435 = vmul.f32 %v1211, %v1386
    %v1436 = vmul.f32 %v1212, %v1391
    %v1437 = vmul.f32 %v1213, %v1396
    %v1438 = vmul.f32 %v1214, %v1401
    %v1439 = vmul.f32 %v1215, %v1406
    %v1440 = vadd.f32 %v1408, %v1409
    %v1441 = vadd.f32 %v1440, %v1410
    %v1442 = vadd.f32 %v1441, %v1411
    %v1443 = vadd.f32 %v1442, %v1412
    %v1444 = vadd.f32 %v1443, %v1413
    %v1445 = vadd.f32 %v1444, %v1414
    %v1446 = vadd.f32 %v1445, %v1415
    %v1447 = vadd.f32 %v1446, %v1416
    %v1448 = vadd.f32 %v1447, %v1417
    %v1449 = vadd.f32 %v1448, %v1418
    %v1450 = vadd.f32 %v1449, %v1419
    %v1451 = vadd.f32 %v1450, %v1420
    %v1452 = vadd.f32 %v1451, %v1421
    %v1453 = vadd.f32 %v1452, %v1422
    %v1454 = vadd.f32 %v1453, %v1423
    %v1455 = vadd.f32 %v1454, %v1424
    %v1456 = vadd.f32 %v1455, %v1425
    %v1457 = vadd.f32 %v1456, %v1426
    %v1458 = vadd.f32 %v1457, %v1427
    %v1459 = vadd.f32 %v1458, %v1428
    %v1460 = vadd.f32 %v1459, %v1429
    %v1461 = vadd.f32 %v1460, %v1430
    %v1462 = vadd.f32 %v1461, %v1431
    %v1463 = vadd.f32 %v1462, %v1432
    %v1464 = vadd.f32 %v1463, %v1433
    %v1465 = vadd.f32 %v1464, %v1434
    %v1466 = vadd.f32 %v1465, %v1435
    %v1467 = vadd.f32 %v1466, %v1436
    %v1468 = vadd.f32 %v1467, %v1437
    %v1469 = vadd.f32 %v1468, %v1438
    %v1470 = vadd.f32 %v1469, %v1439
    %v1471 = vrot.slane %v1470, 4
    %v1472 = vadd.f32 %v1470, %v1471
    %v1473 = vrot.slane %v1472, 2
    %v1474 = vadd.f32 %v1472, %v1473
    %v1475 = vrot.slane %v1474, 1
    %v1476 = vadd.f32 %v1474, %v1475
    %s1477 = sld [smem:[#allocation2]]
    %v1478 = vstv %s1477
    %v1479 = vadd.f32 %v1476, %v1478
    %1480 = vst [vmem:[#allocation3] sm:$0x1] %v1479
    // Predicated region
    $region30: #{tpu_custom_call.1} parent=1 // pred_check
      _
    $region31: #{tpu_custom_call.1} parent=1 // pred_check_branch
      %1482 = sbr.rel (0) target = $region33
    $region32: #{tpu_custom_call.1} parent=1 // pred_region
      %s1484 = ssub.s32 16, 16
      %1485 = vsyncadd [#allocation4], %s1484
      %s1487 = sshll.u32 [#allocation3], 4
      %s1488 = int_to_ptr.vmem [resolvable:$true] %s1487
      %1490 = dma.vmem_to_hbm [thread:$0]  %s1488, 16, %s7, [#allocation4]
    $region33: #{tpu_custom_call.1} parent=1 // pred_fallthru
      _
    // Predicated region
    $region34: #{tpu_custom_call.1} parent=1 // pred_check
      _
    $region35: #{tpu_custom_call.1} parent=1 // pred_check_branch
      %1492 = sbr.rel (0) target = $region37
    $region36: #{tpu_custom_call.1} parent=1 // pred_region
      %1493 = dma.done [#allocation4], 16
    $region37: #{tpu_custom_call.1} parent=1 // pred_fallthru
      _
    %1494 = vsyncpa [#allocation4], 1

</llo_original>
